<compile_context>
chip_gen: v5e
topology: v5e:2x2
jax: 0.10.0
libtpu: 0.0.40
codegen_flags: <defaults>
</compile_context>

<pallas_src>
import jax
import jax.numpy as jnp
from jax.experimental import pallas as pl
from jax.experimental.pallas import tpu as pltpu

_LANE = 128


def _round_up(x, m):
    return ((x + m - 1) // m) * m


def _mlp_kernel(x_ref, w1_ref, b1_ref, w2_ref, b2_ref,
                w3_ref, b3_ref, w4_ref, b4_ref, o_ref):
    # One (TM, C) row tile per grid step; weights/biases are resident across
    # the whole grid.  bf16 MXU matmuls, f32 accumulation, f32 bias add.
    x = x_ref[...].astype(jnp.bfloat16)
    h = jnp.dot(x, w1_ref[...], preferred_element_type=jnp.float32) + b1_ref[...]
    h = jnp.dot(h.astype(jnp.bfloat16), w2_ref[...],
                preferred_element_type=jnp.float32) + b2_ref[...]
    h = jnp.dot(h.astype(jnp.bfloat16), w3_ref[...],
                preferred_element_type=jnp.float32) + b3_ref[...]
    h = jnp.dot(h.astype(jnp.bfloat16), w4_ref[...],
                preferred_element_type=jnp.float32) + b4_ref[...]
    o_ref[...] = h  # lane-dense (TM, 128) f32 store


def classifier_forward(x, params, *, tm=512):
    """x: (B, S, C_in) float32.  params: dict of (in,out) weights, (1,out) biases."""
    B, S, C = x.shape
    M = B * S
    n_class = params["w4"].shape[1]
    n_out = _round_up(max(n_class, _LANE), _LANE)      # lane-dense output width
    d1 = params["w1"].shape[1]
    d2 = params["w2"].shape[1]
    d3 = params["w4"].shape[0]

    # bf16 weights for MXU throughput; biases stay f32 (added to f32 accum).
    w1 = params["w1"].astype(jnp.bfloat16)
    w2 = params["w2"].astype(jnp.bfloat16)
    w3 = params["w3"].astype(jnp.bfloat16)
    w4 = jnp.zeros((d3, n_out), jnp.float32).at[:, :n_class].set(
        params["w4"]).astype(jnp.bfloat16)
    b4 = jnp.zeros((1, n_out), jnp.float32).at[:, :n_class].set(params["b4"])
    b1, b2, b3 = params["b1"], params["b2"], params["b3"]

    # Row tiling: pad M up to a whole number of tiles so every block is full.
    tm_eff = min(tm, _round_up(M, 8))
    mp = _round_up(M, tm_eff)
    xf = x.reshape(M, C).astype(jnp.float32)
    if mp != M:
        xf = jnp.pad(xf, ((0, mp - M), (0, 0)))

    flops = 2 * mp * (C * d1 + d1 * d2 + d2 * d3 + d3 * n_out)
    bytes_accessed = (xf.size * 4
                      + (w1.size + w2.size + w3.size + w4.size) * 2
                      + (b1.size + b2.size + b3.size + b4.size) * 4
                      + mp * n_out * 4)

    def resident(shape):
        return pl.BlockSpec(shape, lambda i: (0, 0))   # fetched once, reused

    grid_spec = pltpu.PrefetchScalarGridSpec(
        num_scalar_prefetch=0,
        grid=(mp // tm_eff,),
        in_specs=[
            pl.BlockSpec((tm_eff, C), lambda i: (i, 0)),
            resident(w1.shape), resident(b1.shape),
            resident(w2.shape), resident(b2.shape),
            resident(w3.shape), resident(b3.shape),
            resident(w4.shape), resident(b4.shape),
        ],
        out_specs=pl.BlockSpec((tm_eff, n_out), lambda i: (i, 0)),
    )

    out = pl.pallas_call(
        _mlp_kernel,
        out_shape=jax.ShapeDtypeStruct((mp, n_out), jnp.float32),
        grid_spec=grid_spec,
        compiler_params=pltpu.CompilerParams(
            dimension_semantics=("parallel",),          # megacore sharding on v7x
            vmem_limit_bytes=56 * 1024 * 1024),         # fits 64 MiB v7x VMEM
        cost_estimate=pl.CostEstimate(
            flops=flops, transcendentals=0, bytes_accessed=bytes_accessed),
    )(xf, w1, b1, w2, b2, w3, b3, w4, b4)

    return out[:M, :n_class].reshape(B, S, n_class)


def init_params(key, n_input_chanells, n_latent_chanells, n_class=7):
    """Deterministic init mimicking nn.Linear (uniform +/- 1/sqrt(fan_in)).
    Weights stored as (in, out) so the kernel does x @ W directly."""
    dims = [
        (n_input_chanells, n_latent_chanells),
        (n_latent_chanells, n_latent_chanells * 2),
        (n_latent_chanells * 2, n_latent_chanells * 4),
        (n_latent_chanells * 4, n_class),
    ]
    params = {}
    for i, (fan_in, fan_out) in enumerate(dims, start=1):
        key, kw, kb = jax.random.split(key, 3)
        bound = 1.0 / jnp.sqrt(fan_in)
        params[f"w{i}"] = jax.random.uniform(
            kw, (fan_in, fan_out), jnp.float32, -bound, bound)
        params[f"b{i}"] = jax.random.uniform(
            kb, (1, fan_out), jnp.float32, -bound, bound)
    return params


def _reference_forward(x, params):
    # Same precision path as the kernel: bf16 operands, f32 accumulation.
    h = x
    for i in range(1, 5):
        w = params[f"w{i}"].astype(jnp.bfloat16)
        h = jnp.dot(h.astype(jnp.bfloat16), w,
                    preferred_element_type=jnp.float32) + params[f"b{i}"]
    return h


if __name__ == "__main__":
    # Small shapes consistent with the module: n_input_chanells=16,
    # n_latent_chanells=32 (real model uses 512), n_class=7.
    B, S = 2, 8
    n_input_chanells = 16
    n_latent_chanells = 32
    n_class = 7

    key = jax.random.PRNGKey(0)
    key, kx = jax.random.split(key)
    x = jax.random.normal(kx, (B, S, n_input_chanells), jnp.float32)

    params = init_params(key, n_input_chanells, n_latent_chanells, n_class)

    out = classifier_forward(x, params)
    out = jax.block_until_ready(out)

    ref = _reference_forward(x, params)
    assert out.shape == (B, S, n_class)
    assert jnp.allclose(out, ref, atol=2e-2, rtol=2e-2)
    print("KERNEL_OK")
</pallas_src>

<mosaic_0001>
module attributes {stable_mosaic.version = 11 : i64} {
  func.func @_mlp_kernel(%arg0: i32, %arg1: memref<16x16xf32, #tpu.memory_space<vmem>>, %arg2: memref<16x32xbf16, #tpu.memory_space<vmem>>, %arg3: memref<1x32xf32, #tpu.memory_space<vmem>>, %arg4: memref<32x64xbf16, #tpu.memory_space<vmem>>, %arg5: memref<1x64xf32, #tpu.memory_space<vmem>>, %arg6: memref<64x128xbf16, #tpu.memory_space<vmem>>, %arg7: memref<1x128xf32, #tpu.memory_space<vmem>>, %arg8: memref<128x128xbf16, #tpu.memory_space<vmem>>, %arg9: memref<1x128xf32, #tpu.memory_space<vmem>>, %arg10: memref<16x128xf32, #tpu.memory_space<vmem>>) attributes {dimension_semantics = [#tpu.dimension_semantics<parallel>], iteration_bounds = array<i64: 1>, scalar_prefetch = 0 : i64, scratch_operands = 0 : i64, tpu.core_type = #tpu.core_type<tc>, window_params = [{transform_indices = @transform_0, window_bounds = array<i64: 16, 16>}, {pipeline_mode = #tpu.pipeline_mode<synchronous>, transform_indices = @transform_1, window_bounds = array<i64: 16, 32>}, {pipeline_mode = #tpu.pipeline_mode<synchronous>, transform_indices = @transform_2, window_bounds = array<i64: 1, 32>}, {pipeline_mode = #tpu.pipeline_mode<synchronous>, transform_indices = @transform_3, window_bounds = array<i64: 32, 64>}, {pipeline_mode = #tpu.pipeline_mode<synchronous>, transform_indices = @transform_4, window_bounds = array<i64: 1, 64>}, {pipeline_mode = #tpu.pipeline_mode<synchronous>, transform_indices = @transform_5, window_bounds = array<i64: 64, 128>}, {pipeline_mode = #tpu.pipeline_mode<synchronous>, transform_indices = @transform_6, window_bounds = array<i64: 1, 128>}, {pipeline_mode = #tpu.pipeline_mode<synchronous>, transform_indices = @transform_7, window_bounds = array<i64: 128, 128>}, {pipeline_mode = #tpu.pipeline_mode<synchronous>, transform_indices = @transform_8, window_bounds = array<i64: 1, 128>}, {transform_indices = @transform_9, window_bounds = array<i64: 16, 128>}]} {
    %c0 = arith.constant 0 : index
    %c0_0 = arith.constant 0 : index
    %0 = vector.load %arg1[%c0, %c0_0] : memref<16x16xf32, #tpu.memory_space<vmem>>, vector<16x16xf32>
    %1 = arith.truncf %0 : vector<16x16xf32> to vector<16x16xbf16>
    %c0_1 = arith.constant 0 : index
    %c0_2 = arith.constant 0 : index
    %2 = vector.load %arg2[%c0_1, %c0_2] : memref<16x32xbf16, #tpu.memory_space<vmem>>, vector<16x32xbf16>
    %cst = arith.constant dense<0.000000e+00> : vector<16x32xf32>
    %3 = tpu.matmul %1, %2, %cst {dimension_numbers = #tpu.dot_dimension_numbers<[1], [0], [0], [1], [0, 0, 1, 1], [], []>} : vector<16x16xbf16>, vector<16x32xbf16>, vector<16x32xf32> -> vector<16x32xf32>
    %c0_3 = arith.constant 0 : index
    %c0_4 = arith.constant 0 : index
    %4 = vector.load %arg3[%c0_3, %c0_4] : memref<1x32xf32, #tpu.memory_space<vmem>>, vector<1x32xf32>
    %5 = vector.broadcast %4 : vector<1x32xf32> to vector<16x32xf32>
    %6 = arith.addf %3, %5 : vector<16x32xf32>
    %7 = arith.truncf %6 : vector<16x32xf32> to vector<16x32xbf16>
    %c0_5 = arith.constant 0 : index
    %c0_6 = arith.constant 0 : index
    %8 = vector.load %arg4[%c0_5, %c0_6] : memref<32x64xbf16, #tpu.memory_space<vmem>>, vector<32x64xbf16>
    %cst_7 = arith.constant dense<0.000000e+00> : vector<16x64xf32>
    %9 = tpu.matmul %7, %8, %cst_7 {dimension_numbers = #tpu.dot_dimension_numbers<[1], [0], [0], [1], [0, 0, 1, 1], [], []>} : vector<16x32xbf16>, vector<32x64xbf16>, vector<16x64xf32> -> vector<16x64xf32>
    %c0_8 = arith.constant 0 : index
    %c0_9 = arith.constant 0 : index
    %10 = vector.load %arg5[%c0_8, %c0_9] : memref<1x64xf32, #tpu.memory_space<vmem>>, vector<1x64xf32>
    %11 = vector.broadcast %10 : vector<1x64xf32> to vector<16x64xf32>
    %12 = arith.addf %9, %11 : vector<16x64xf32>
    %13 = arith.truncf %12 : vector<16x64xf32> to vector<16x64xbf16>
    %c0_10 = arith.constant 0 : index
    %c0_11 = arith.constant 0 : index
    %14 = vector.load %arg6[%c0_10, %c0_11] : memref<64x128xbf16, #tpu.memory_space<vmem>>, vector<64x128xbf16>
    %cst_12 = arith.constant dense<0.000000e+00> : vector<16x128xf32>
    %15 = tpu.matmul %13, %14, %cst_12 {dimension_numbers = #tpu.dot_dimension_numbers<[1], [0], [0], [1], [0, 0, 1, 1], [], []>} : vector<16x64xbf16>, vector<64x128xbf16>, vector<16x128xf32> -> vector<16x128xf32>
    %c0_13 = arith.constant 0 : index
    %c0_14 = arith.constant 0 : index
    %16 = vector.load %arg7[%c0_13, %c0_14] : memref<1x128xf32, #tpu.memory_space<vmem>>, vector<1x128xf32>
    %17 = vector.broadcast %16 : vector<1x128xf32> to vector<16x128xf32>
    %18 = arith.addf %15, %17 : vector<16x128xf32>
    %19 = arith.truncf %18 : vector<16x128xf32> to vector<16x128xbf16>
    %c0_15 = arith.constant 0 : index
    %c0_16 = arith.constant 0 : index
    %20 = vector.load %arg8[%c0_15, %c0_16] : memref<128x128xbf16, #tpu.memory_space<vmem>>, vector<128x128xbf16>
    %cst_17 = arith.constant dense<0.000000e+00> : vector<16x128xf32>
    %21 = tpu.matmul %19, %20, %cst_17 {dimension_numbers = #tpu.dot_dimension_numbers<[1], [0], [0], [1], [0, 0, 1, 1], [], []>} : vector<16x128xbf16>, vector<128x128xbf16>, vector<16x128xf32> -> vector<16x128xf32>
    %c0_18 = arith.constant 0 : index
    %c0_19 = arith.constant 0 : index
    %22 = vector.load %arg9[%c0_18, %c0_19] : memref<1x128xf32, #tpu.memory_space<vmem>>, vector<1x128xf32>
    %23 = vector.broadcast %22 : vector<1x128xf32> to vector<16x128xf32>
    %24 = arith.addf %21, %23 : vector<16x128xf32>
    %c0_20 = arith.constant 0 : index
    %c0_21 = arith.constant 0 : index
    %25 = vector.load %arg10[%c0_20, %c0_21] : memref<16x128xf32, #tpu.memory_space<vmem>>, vector<16x128xf32>
    tpu.vector_store %arg10[%c0_20, %c0_21], %24 {strides = array<i32>} : memref<16x128xf32, #tpu.memory_space<vmem>>, vector<16x128xf32>,
    return
  }
  func.func @transform_0(%arg0: i32) -> (i32, i32) {
    %c0_i32 = arith.constant 0 : i32
    %c0_i32_0 = arith.constant 0 : i32
    return %arg0, %c0_i32 : i32, i32
  }
  func.func @transform_1(%arg0: i32) -> (i32, i32) {
    %c0_i32 = arith.constant 0 : i32
    %c0_i32_0 = arith.constant 0 : i32
    %c0_i32_1 = arith.constant 0 : i32
    return %c0_i32, %c0_i32_0 : i32, i32
  }
  func.func @transform_2(%arg0: i32) -> (i32, i32) {
    %c0_i32 = arith.constant 0 : i32
    %c0_i32_0 = arith.constant 0 : i32
    %c0_i32_1 = arith.constant 0 : i32
    return %c0_i32, %c0_i32_0 : i32, i32
  }
  func.func @transform_3(%arg0: i32) -> (i32, i32) {
    %c0_i32 = arith.constant 0 : i32
    %c0_i32_0 = arith.constant 0 : i32
    %c0_i32_1 = arith.constant 0 : i32
    return %c0_i32, %c0_i32_0 : i32, i32
  }
  func.func @transform_4(%arg0: i32) -> (i32, i32) {
    %c0_i32 = arith.constant 0 : i32
    %c0_i32_0 = arith.constant 0 : i32
    %c0_i32_1 = arith.constant 0 : i32
    return %c0_i32, %c0_i32_0 : i32, i32
  }
  func.func @transform_5(%arg0: i32) -> (i32, i32) {
    %c0_i32 = arith.constant 0 : i32
    %c0_i32_0 = arith.constant 0 : i32
    %c0_i32_1 = arith.constant 0 : i32
    return %c0_i32, %c0_i32_0 : i32, i32
  }
  func.func @transform_6(%arg0: i32) -> (i32, i32) {
    %c0_i32 = arith.constant 0 : i32
    %c0_i32_0 = arith.constant 0 : i32
    %c0_i32_1 = arith.constant 0 : i32
    return %c0_i32, %c0_i32_0 : i32, i32
  }
  func.func @transform_7(%arg0: i32) -> (i32, i32) {
    %c0_i32 = arith.constant 0 : i32
    %c0_i32_0 = arith.constant 0 : i32
    %c0_i32_1 = arith.constant 0 : i32
    return %c0_i32, %c0_i32_0 : i32, i32
  }
  func.func @transform_8(%arg0: i32) -> (i32, i32) {
    %c0_i32 = arith.constant 0 : i32
    %c0_i32_0 = arith.constant 0 : i32
    %c0_i32_1 = arith.constant 0 : i32
    return %c0_i32, %c0_i32_0 : i32, i32
  }
  func.func @transform_9(%arg0: i32) -> (i32, i32) {
    %c0_i32 = arith.constant 0 : i32
    %c0_i32_0 = arith.constant 0 : i32
    return %arg0, %c0_i32 : i32, i32
  }
}

</mosaic_0001>

<llo_original>
// kernel: tpu_custom_call.1
$region0: #{tpu_custom_call.1}
  #allocation0 [shape = 'u32[]', space=smem, size = 0x4, offset = 0x4, fixed_abs, tag = 'smem constant byte address 0x4 - core index']
  #allocation1 [shape = 'u32[72,128]{1,0:T(1,128)}', space=vmem, size = 0x9000, scoped, tag = 'internal scratch']
  %s0 = inlined_call_operand.hbm [shape: f32[16,16], index: 0, kind: input, shape index: {}]
  %s1 = inlined_call_operand.hbm [shape: bf16[16,32], index: 1, kind: input, shape index: {}]
  %s2 = inlined_call_operand.vmem [shape: f32[1,32], index: 2, kind: input, shape index: {}]
  %s3 = inlined_call_operand.hbm [shape: bf16[32,64], index: 3, kind: input, shape index: {}]
  %s4 = inlined_call_operand.vmem [shape: f32[1,64], index: 4, kind: input, shape index: {}]
  %s5 = inlined_call_operand.hbm [shape: bf16[64,128], index: 5, kind: input, shape index: {}]
  %s6 = inlined_call_operand.vmem [shape: f32[1,128], index: 6, kind: input, shape index: {}]
  %s7 = inlined_call_operand.hbm [shape: bf16[128,128], index: 7, kind: input, shape index: {}]
  %s8 = inlined_call_operand.vmem [shape: f32[1,128], index: 8, kind: input, shape index: {}]
  %s9 = inlined_call_operand.hbm [shape: f32[16,128], index: 9, kind: output, shape index: {}]
  %s10 = sld [smem:[#allocation0]]
  $region66: #{tpu_custom_call.1} parent=0
    _
  %s12 = ssub.s32 1, %s10
  %s13 = scalar_select 0, %s12, %s10
  $region1: #{tpu_custom_call.1} parent=0
    #allocation2 [shape = 'u8[8192]{0}', space=vmem, size = 0x2000, scoped, tag = 'input window, operand 0, single buffered']
    #allocation3 [shape = 's32[1]{0}', space=sflag, size = 0x4, scoped, tag = 'scoped memory for tpu_custom_call.1']
    #allocation4 [shape = 's32[1]{0}', space=sflag, size = 0x4, scoped, tag = 'scoped memory for tpu_custom_call.1']
    #allocation5 [shape = 'u8[4096]{0}', space=vmem, size = 0x1000, scoped, tag = 'input window, operand 1, single buffered']
    #allocation6 [shape = 's32[1]{0}', space=sflag, size = 0x4, scoped, tag = 'scoped memory for tpu_custom_call.1']
    #allocation7 [shape = 'u8[8192]{0}', space=vmem, size = 0x2000, scoped, tag = 'input window, operand 3, single buffered']
    #allocation8 [shape = 'u8[16384]{0}', space=vmem, size = 0x4000, scoped, tag = 'input window, operand 5, single buffered']
    #allocation9 [shape = 's32[1]{0}', space=sflag, size = 0x4, scoped, tag = 'scoped memory for tpu_custom_call.1']
    #allocation10 [shape = 'u8[32768]{0}', space=vmem, size = 0x8000, scoped, tag = 'input window, operand 7, single buffered']
    #allocation11 [shape = 'u8[8192]{0}', space=vmem, size = 0x2000, scoped, tag = 'output window, operand 0, single buffered']
    %14 = vsyncpa [#allocation3], 0
    %15 = vsyncpa [#allocation6], 0
    %16 = vsyncpa [#allocation9], 0
    %17 = vsyncpa [#allocation4], 0
    // Predicated region
    $region2: #{tpu_custom_call.1} parent=1 // pred_check
      _
    $region3: #{tpu_custom_call.1} parent=1 // pred_check_branch
      %19 = sbr.rel (0) target = $region5
    $region4: #{tpu_custom_call.1} parent=1 // pred_region
      %21 = vsyncadd [#allocation3], 0
      %s22 = sshll.u32 %s0, 4
      %s23 = int_to_ptr.hbm [resolvable:$true] %s22
      %s24 = sshll.u32 [#allocation2], 4
      %s25 = int_to_ptr.vmem [resolvable:$true] %s24
      %30 = dma.hbm_to_vmem [thread:$0]  %s23, 256, %s25, [#allocation3], 128, 128, 8
    $region5: #{tpu_custom_call.1} parent=1 // pred_fallthru
      _
    // Predicated region
    $region6: #{tpu_custom_call.1} parent=1 // pred_check
      _
    $region7: #{tpu_custom_call.1} parent=1 // pred_check_branch
      %32 = sbr.rel (0) target = $region9
    $region8: #{tpu_custom_call.1} parent=1 // pred_region
      %34 = vsyncadd [#allocation6], 0
      %s35 = sshll.u32 %s1, 4
      %s36 = int_to_ptr.hbm [resolvable:$true] %s35
      %s37 = sshll.u32 [#allocation5], 4
      %s38 = int_to_ptr.vmem [resolvable:$true] %s37
      %43 = dma.hbm_to_vmem [thread:$0]  %s36, 128, %s38, [#allocation6], 64, 64, 4
    $region9: #{tpu_custom_call.1} parent=1 // pred_fallthru
      _
    // Predicated region
    $region10: #{tpu_custom_call.1} parent=1 // pred_check
      _
    $region11: #{tpu_custom_call.1} parent=1 // pred_check_branch
      %45 = sbr.rel (0) target = $region13
    $region12: #{tpu_custom_call.1} parent=1 // pred_region
      _
    $region13: #{tpu_custom_call.1} parent=1 // pred_fallthru
      _
    // Predicated region
    $region14: #{tpu_custom_call.1} parent=1 // pred_check
      _
    $region15: #{tpu_custom_call.1} parent=1 // pred_check_branch
      %47 = sbr.rel (0) target = $region17
    $region16: #{tpu_custom_call.1} parent=1 // pred_region
      %49 = vsyncadd [#allocation6], 0
      %s50 = sshll.u32 %s3, 4
      %s51 = int_to_ptr.hbm [resolvable:$true] %s50
      %s52 = sshll.u32 [#allocation7], 4
      %s53 = int_to_ptr.vmem [resolvable:$true] %s52
      %58 = dma.hbm_to_vmem [thread:$0]  %s51, 256, %s53, [#allocation6], 64, 64, 4
    $region17: #{tpu_custom_call.1} parent=1 // pred_fallthru
      _
    // Predicated region
    $region18: #{tpu_custom_call.1} parent=1 // pred_check
      _
    $region19: #{tpu_custom_call.1} parent=1 // pred_check_branch
      %60 = sbr.rel (0) target = $region21
    $region20: #{tpu_custom_call.1} parent=1 // pred_region
      _
    $region21: #{tpu_custom_call.1} parent=1 // pred_fallthru
      _
    // Predicated region
    $region22: #{tpu_custom_call.1} parent=1 // pred_check
      _
    $region23: #{tpu_custom_call.1} parent=1 // pred_check_branch
      %62 = sbr.rel (0) target = $region25
    $region24: #{tpu_custom_call.1} parent=1 // pred_region
      %64 = vsyncadd [#allocation9], 0
      %s65 = sshll.u32 %s5, 4
      %s66 = int_to_ptr.hbm [resolvable:$true] %s65
      %s67 = sshll.u32 [#allocation8], 4
      %s68 = int_to_ptr.vmem [resolvable:$true] %s67
      %73 = dma.hbm_to_vmem [thread:$0]  %s66, 512, %s68, [#allocation9], 64, 64, 4
    $region25: #{tpu_custom_call.1} parent=1 // pred_fallthru
      _
    // Predicated region
    $region26: #{tpu_custom_call.1} parent=1 // pred_check
      _
    $region27: #{tpu_custom_call.1} parent=1 // pred_check_branch
      %75 = sbr.rel (0) target = $region29
    $region28: #{tpu_custom_call.1} parent=1 // pred_region
      _
    $region29: #{tpu_custom_call.1} parent=1 // pred_fallthru
      _
    // Predicated region
    $region30: #{tpu_custom_call.1} parent=1 // pred_check
      _
    $region31: #{tpu_custom_call.1} parent=1 // pred_check_branch
      %77 = sbr.rel (0) target = $region33
    $region32: #{tpu_custom_call.1} parent=1 // pred_region
      %79 = vsyncadd [#allocation9], 0
      %s80 = sshll.u32 %s7, 4
      %s81 = int_to_ptr.hbm [resolvable:$true] %s80
      %s82 = sshll.u32 [#allocation10], 4
      %s83 = int_to_ptr.vmem [resolvable:$true] %s82
      %88 = dma.hbm_to_vmem [thread:$0]  %s81, 1024, %s83, [#allocation9], 64, 64, 4
    $region33: #{tpu_custom_call.1} parent=1 // pred_fallthru
      _
    // Predicated region
    $region34: #{tpu_custom_call.1} parent=1 // pred_check
      _
    $region35: #{tpu_custom_call.1} parent=1 // pred_check_branch
      %90 = sbr.rel (0) target = $region37
    $region36: #{tpu_custom_call.1} parent=1 // pred_region
      _
    $region37: #{tpu_custom_call.1} parent=1 // pred_fallthru
      _
    // Predicated region
    $region38: #{tpu_custom_call.1} parent=1 // pred_check
      _
    $region39: #{tpu_custom_call.1} parent=1 // pred_check_branch
      %92 = sbr.rel (0) target = $region41
    $region40: #{tpu_custom_call.1} parent=1 // pred_region
      %94 = dma.done [#allocation3], 256
    $region41: #{tpu_custom_call.1} parent=1 // pred_fallthru
      _
    // Predicated region
    $region42: #{tpu_custom_call.1} parent=1 // pred_check
      _
    $region43: #{tpu_custom_call.1} parent=1 // pred_check_branch
      %96 = sbr.rel (0) target = $region45
    $region44: #{tpu_custom_call.1} parent=1 // pred_region
      %98 = dma.done [#allocation6], 128
    $region45: #{tpu_custom_call.1} parent=1 // pred_fallthru
      _
    // Predicated region
    $region46: #{tpu_custom_call.1} parent=1 // pred_check
      _
    $region47: #{tpu_custom_call.1} parent=1 // pred_check_branch
      %100 = sbr.rel (0) target = $region49
    $region48: #{tpu_custom_call.1} parent=1 // pred_region
      %102 = dma.done [#allocation6], 256
    $region49: #{tpu_custom_call.1} parent=1 // pred_fallthru
      _
    // Predicated region
    $region50: #{tpu_custom_call.1} parent=1 // pred_check
      _
    $region51: #{tpu_custom_call.1} parent=1 // pred_check_branch
      %104 = sbr.rel (0) target = $region53
    $region52: #{tpu_custom_call.1} parent=1 // pred_region
      %106 = dma.done [#allocation9], 512
    $region53: #{tpu_custom_call.1} parent=1 // pred_fallthru
      _
    // Predicated region
    $region54: #{tpu_custom_call.1} parent=1 // pred_check
      _
    $region55: #{tpu_custom_call.1} parent=1 // pred_check_branch
      %108 = sbr.rel (0) target = $region57
    $region56: #{tpu_custom_call.1} parent=1 // pred_region
      %110 = dma.done [#allocation9], 1024
    $region57: #{tpu_custom_call.1} parent=1 // pred_fallthru
      _
    %v112 = vld [vmem:[#allocation2] sm:$0xff]
    %v113 = vld [vmem:[#allocation2 + $0x8] sm:$0xff]
    %v114 = vpack.c.bf16 %v113, %v112
    %v115 = vld [vmem:[#allocation5] sm:$0xf]
    %v116 = vld [vmem:[#allocation5 + $0x4] sm:$0xf]
    %v117 = vld [vmem:[%s2] sm:$0x1]
    %v119 = vperm.slane %v117, 0
    %v123 = vunpack.c.l.b16 %v115
    %v124 = vunpack.c.l.b16 %v116
    %v125 = vpack.c.b16 %v124, %v123
    %vm127 = vcmask 130048
    %v129 = vsel %vm127, %v114, 0
    %131 = vmatpush.bf16.msra.mxu0 0
    %132 = vmatpush.bf16.msra.mxu0 0
    %133 = vmatpush.bf16.msra.mxu0 0
    %134 = vmatpush.bf16.msra.mxu0 0
    %135 = vmatpush.bf16.msra.mxu0 0
    %136 = vmatpush.bf16.msra.mxu0 0
    %137 = vmatpush.bf16.msra.mxu0 0
    %138 = vmatpush.bf16.msra.mxu0 %v125
    %139 = vmatmul.bf16.gmra.mxu0 %v129
    %v140 = vpop.f32.mrf.mxu0
    %v141 = vadd.f32 %v119, %v140
    %v142 = vpop.f32.mrf.mxu0
    %v143 = vadd.f32 %v119, %v142
    %144 = vdwg.mxu0
    %v145 = vpack.c.bf16 %v143, %v141
    %v146 = vld [vmem:[#allocation7] sm:$0xf]
    %v147 = vld [vmem:[#allocation7 + $0x4] sm:$0xf]
    %v148 = vld [vmem:[#allocation7 + $0x8] sm:$0xf]
    %v149 = vld [vmem:[#allocation7 + $0xc] sm:$0xf]
    %v150 = vld [vmem:[%s4] sm:$0x1]
    %v152 = vperm.slane %v150, 0
    %v158 = vunpack.c.l.b16 %v146
    %v159 = vunpack.c.l.b16 %v147
    %v160 = vunpack.c.l.b16 %v148
    %v161 = vunpack.c.l.b16 %v149
    %v162 = vpack.c.b16 %v159, %v158
    %v163 = vpack.c.b16 %v161, %v160
    %vm166 = vcmask 261120
    %v168 = vsel %vm166, %v145, 0
    %170 = vmatpush.bf16.msra.mxu0 0
    %171 = vmatpush.bf16.msra.mxu0 0
    %172 = vmatpush.bf16.msra.mxu0 0
    %173 = vmatpush.bf16.msra.mxu0 0
    %174 = vmatpush.bf16.msra.mxu0 0
    %175 = vmatpush.bf16.msra.mxu0 0
    %176 = vmatpush.bf16.msra.mxu0 %v163
    %177 = vmatpush.bf16.msra.mxu0 %v162
    %178 = vmatmul.bf16.gmra.mxu0 %v168
    %v179 = vpop.f32.mrf.mxu0
    %v180 = vadd.f32 %v152, %v179
    %v181 = vpop.f32.mrf.mxu0
    %v182 = vadd.f32 %v152, %v181
    %183 = vdwg.mxu0
    %v184 = vpack.c.bf16 %v182, %v180
    %v185 = vld [vmem:[#allocation8] sm:$0xf]
    %v186 = vld [vmem:[#allocation8 + $0x4] sm:$0xf]
    %v187 = vld [vmem:[#allocation8 + $0x8] sm:$0xf]
    %v188 = vld [vmem:[#allocation8 + $0xc] sm:$0xf]
    %v189 = vld [vmem:[#allocation8 + $0x10] sm:$0xf]
    %v190 = vld [vmem:[#allocation8 + $0x14] sm:$0xf]
    %v191 = vld [vmem:[#allocation8 + $0x18] sm:$0xf]
    %v192 = vld [vmem:[#allocation8 + $0x1c] sm:$0xf]
    %v193 = vld [vmem:[%s6] sm:$0x1]
    %v195 = vperm.slane %v193, 0
    %v205 = vunpack.c.l.b16 %v185
    %v206 = vunpack.c.l.b16 %v186
    %v207 = vunpack.c.l.b16 %v187
    %v208 = vunpack.c.l.b16 %v188
    %v209 = vunpack.c.l.b16 %v189
    %v210 = vunpack.c.l.b16 %v190
    %v211 = vunpack.c.l.b16 %v191
    %v212 = vunpack.c.l.b16 %v192
    %v213 = vpack.c.b16 %v206, %v205
    %v214 = vpack.c.b16 %v208, %v207
    %v215 = vpack.c.b16 %v210, %v209
    %v216 = vpack.c.b16 %v212, %v211
    %vm221 = vcmask 523264
    %v223 = vsel %vm221, %v184, 0
    %225 = vmatpush.bf16.msra.mxu0 0
    %226 = vmatpush.bf16.msra.mxu0 0
    %227 = vmatpush.bf16.msra.mxu0 0
    %228 = vmatpush.bf16.msra.mxu0 0
    %229 = vmatpush.bf16.msra.mxu0 %v216
    %230 = vmatpush.bf16.msra.mxu0 %v215
    %231 = vmatpush.bf16.msra.mxu0 %v214
    %232 = vmatpush.bf16.msra.mxu0 %v213
    %233 = vmatmul.bf16.gmra.mxu0 %v223
    %v234 = vpop.f32.mrf.mxu0
    %v235 = vadd.f32 %v195, %v234
    %v236 = vpop.f32.mrf.mxu0
    %v237 = vadd.f32 %v195, %v236
    %238 = vdwg.mxu0
    %v239 = vpack.c.bf16 %v237, %v235
    %v240 = vld [vmem:[#allocation10] sm:$0xf]
    %v241 = vld [vmem:[#allocation10 + $0x4] sm:$0xf]
    %v242 = vld [vmem:[#allocation10 + $0x8] sm:$0xf]
    %v243 = vld [vmem:[#allocation10 + $0xc] sm:$0xf]
    %v244 = vld [vmem:[#allocation10 + $0x10] sm:$0xf]
    %v245 = vld [vmem:[#allocation10 + $0x14] sm:$0xf]
    %v246 = vld [vmem:[#allocation10 + $0x18] sm:$0xf]
    %v247 = vld [vmem:[#allocation10 + $0x1c] sm:$0xf]
    %v248 = vld [vmem:[#allocation10 + $0x20] sm:$0xf]
    %v249 = vld [vmem:[#allocation10 + $0x24] sm:$0xf]
    %v250 = vld [vmem:[#allocation10 + $0x28] sm:$0xf]
    %v251 = vld [vmem:[#allocation10 + $0x2c] sm:$0xf]
    %v252 = vld [vmem:[#allocation10 + $0x30] sm:$0xf]
    %v253 = vld [vmem:[#allocation10 + $0x34] sm:$0xf]
    %v254 = vld [vmem:[#allocation10 + $0x38] sm:$0xf]
    %v255 = vld [vmem:[#allocation10 + $0x3c] sm:$0xf]
    %v256 = vld [vmem:[%s8] sm:$0x1]
    %v258 = vperm.slane %v256, 0
    %v276 = vunpack.c.l.b16 %v240
    %v277 = vunpack.c.l.b16 %v241
    %v278 = vunpack.c.l.b16 %v242
    %v279 = vunpack.c.l.b16 %v243
    %v280 = vunpack.c.l.b16 %v244
    %v281 = vunpack.c.l.b16 %v245
    %v282 = vunpack.c.l.b16 %v246
    %v283 = vunpack.c.l.b16 %v247
    %v284 = vunpack.c.l.b16 %v248
    %v285 = vunpack.c.l.b16 %v249
    %v286 = vunpack.c.l.b16 %v250
    %v287 = vunpack.c.l.b16 %v251
    %v288 = vunpack.c.l.b16 %v252
    %v289 = vunpack.c.l.b16 %v253
    %v290 = vunpack.c.l.b16 %v254
    %v291 = vunpack.c.l.b16 %v255
    %v292 = vpack.c.b16 %v277, %v276
    %v293 = vpack.c.b16 %v279, %v278
    %v294 = vpack.c.b16 %v281, %v280
    %v295 = vpack.c.b16 %v283, %v282
    %v296 = vpack.c.b16 %v285, %v284
    %v297 = vpack.c.b16 %v287, %v286
    %v298 = vpack.c.b16 %v289, %v288
    %v299 = vpack.c.b16 %v291, %v290
    %308 = vmatpush.bf16.msra.mxu0 %v299
    %309 = vmatpush.bf16.msra.mxu0 %v298
    %310 = vmatpush.bf16.msra.mxu0 %v297
    %311 = vmatpush.bf16.msra.mxu0 %v296
    %312 = vmatpush.bf16.msra.mxu0 %v295
    %313 = vmatpush.bf16.msra.mxu0 %v294
    %314 = vmatpush.bf16.msra.mxu0 %v293
    %315 = vmatpush.bf16.msra.mxu0 %v292
    %316 = vmatmul.bf16.gmra.mxu0 %v239
    %v317 = vpop.f32.mrf.mxu0
    %v318 = vadd.f32 %v258, %v317
    %v319 = vpop.f32.mrf.mxu0
    %v320 = vadd.f32 %v258, %v319
    %321 = vdwg.mxu0
    %322 = vst [vmem:[#allocation11] sm:$0xff] %v318
    %323 = vst [vmem:[#allocation11 + $0x8] sm:$0xff] %v320
    // Predicated region
    $region58: #{tpu_custom_call.1} parent=1 // pred_check
      _
    $region59: #{tpu_custom_call.1} parent=1 // pred_check_branch
      %325 = sbr.rel (0) target = $region61
    $region60: #{tpu_custom_call.1} parent=1 // pred_region
      %327 = vsyncadd [#allocation4], 0
      %s328 = sshll.u32 [#allocation11], 4
      %s329 = int_to_ptr.vmem [resolvable:$true] %s328
      %s330 = sshll.u32 %s9, 4
      %s331 = int_to_ptr.hbm [resolvable:$true] %s330
      %336 = dma.vmem_to_hbm [thread:$0]  %s329, 256, %s331, [#allocation4], 128, 128, 8
    $region61: #{tpu_custom_call.1} parent=1 // pred_fallthru
      _
    // Predicated region
    $region62: #{tpu_custom_call.1} parent=1 // pred_check
      _
    $region63: #{tpu_custom_call.1} parent=1 // pred_check_branch
      %338 = sbr.rel (0) target = $region65
    $region64: #{tpu_custom_call.1} parent=1 // pred_region
      %340 = dma.done [#allocation4], 256
    $region65: #{tpu_custom_call.1} parent=1 // pred_fallthru
      _
    %341 = vsyncpa [#allocation3], 1
    %342 = vsyncpa [#allocation6], 1
    %343 = vsyncpa [#allocation9], 1
    %344 = vsyncpa [#allocation4], 1

</llo_original>
